<compile_context>
chip_gen: v7x
topology: tpu7x:2x2x1
jax: 0.10.0
libtpu: 0.0.40
codegen_flags: <defaults>
</compile_context>

<pallas_src>
import functools

import jax
import jax.numpy as jnp
from jax.experimental import pallas as pl
from jax.experimental.pallas import tpu as pltpu

# F.pairwise_distance default eps.
_PAIRWISE_EPS = 1e-6

_SMALL_SIZE_THRESHOLD = 64 * 1024       # elements; below this XLA fusion wins
_MIB = 1024 * 1024


def _tpu_hw():
    """(physical_vmem_bytes, tensorcores_per_chip) with safe fallbacks."""
    vmem = None
    cores = None
    try:
        info = pltpu.get_tpu_info()
        v = int(getattr(info, "vmem_capacity_bytes", 0) or 0)
        vmem = v if v > 0 else None
        for name in ("num_cores", "num_tensorcores", "tensorcore_count",
                     "cores_per_chip"):
            c = getattr(info, name, None)
            if isinstance(c, int) and c > 0:
                cores = c
                break
    except Exception:
        pass
    if vmem is None:
        vmem = 64 * _MIB                  # conservative: v7x per-TC size
    if cores is None:
        # Heuristic: 64 MiB-per-core parts (v7x) have 2 TensorCores per chip;
        # 128 MiB parts (v5e/v6e) have 1.
        cores = 2 if vmem <= 64 * _MIB else 1
    return vmem, cores


def _vmem_budgets(physical_vmem):
    if physical_vmem >= 128 * _MIB:       # v5e / v6e
        scoped_limit = 64 * _MIB
    else:                                 # v7x (64 MiB per TC)
        scoped_limit = 32 * _MIB
    input_budget = (scoped_limit * 3) // 4
    return scoped_limit, input_budget


def _sublane_multiple(itemsize):
    # f32 -> 8, bf16 -> 16, int8/fp8 -> 32 (native sublane packing).
    return max(8, 32 // max(int(itemsize), 1))


def _round_up(x, m):
    return ((x + m - 1) // m) * m


def _pick_tile_rows(batch, feat_dim, itemsize, input_budget, sublane):
    # Per row of one grid step, double-buffered (2 pipeline buffers):
    #   o1 + o2 blocks: 2 inputs * feat_dim * itemsize
    #   target block:   (tb,1) f32 lane-pads to 128 lanes -> 128*4 bytes/row
    n_buf = 2
    bytes_per_row = n_buf * (2 * feat_dim * itemsize + 128 * 4)
    tb = input_budget // max(bytes_per_row, 1)
    tb = max((tb // sublane) * sublane, sublane)
    if tb >= batch:
        tb = batch        # single tile: block dim == full array dim (always legal)
    return tb


def _contrastive_loss_kernel(margin_ref, o1_ref, o2_ref, t_ref, out_ref, acc_ref,
                             *, tb, total_rows, tiles_per_core):
    # margin_ref: (1,)   f32 SMEM (scalar prefetch)
    # o1_ref/o2_ref: (tb, D) native dtype, VMEM
    # t_ref:      (tb, 1) f32 VMEM
    # out_ref:    (1, 1)  f32 VMEM (one row per "parallel" core partition)
    # acc_ref:    (1, 1)  f32 VMEM scratch accumulator
    c = pl.program_id(0)          # "parallel" core-partition axis
    j = pl.program_id(1)          # "arbitrary" reduction axis over batch tiles

    @pl.when(j == 0)
    def _():
        acc_ref[...] = jnp.zeros_like(acc_ref)

    g = c * tiles_per_core + j    # global batch-tile index

    o1 = o1_ref[...].astype(jnp.float32)                       # upcast in-register
    o2 = o2_ref[...].astype(jnp.float32)
    diff = o1 - o2 + _PAIRWISE_EPS                             # (tb, D)  VPU
    d2 = jnp.sum(diff * diff, axis=1, keepdims=True)           # (tb, 1)  XLU reduce
    d = jnp.sqrt(d2)                                           # (tb, 1)  EUP
    t = t_ref[...]                                             # (tb, 1)  f32
    margin = margin_ref[0]
    hinge = jnp.maximum(margin - d, 0.0)
    # 0.5 factor and the 1/B mean are folded into the wrapper.
    loss = (1.0 - t) * d2 + t * hinge * hinge                  # (tb, 1)

    # Mask only when this tile actually spills past the batch (partial last
    # tile or ghost tile); full interior tiles take the cheap path.
    needs_mask = (g + 1) * tb > total_rows

    @pl.when(jnp.logical_not(needs_mask))
    def _():
        acc_ref[...] += jnp.sum(loss, axis=0, keepdims=True)

    @pl.when(needs_mask)
    def _():
        row_ids = g * tb + jax.lax.broadcasted_iota(jnp.int32, (tb, 1), 0)
        masked = jnp.where(row_ids < total_rows, loss, 0.0)    # drop pad/ghost rows
        acc_ref[...] += jnp.sum(masked, axis=0, keepdims=True)

    @pl.when(j == pl.num_programs(1) - 1)
    def _():
        out_ref[...] = acc_ref[...]


def contrastive_loss(output1, output2, target, margin, *,
                     force_pallas=False, tile_rows=None):
    """Pallas TPU implementation of ContrastiveLoss(margin).forward."""
    assert output1.shape == output2.shape and output1.ndim == 2
    B, D = output1.shape

    if not force_pallas and B * D < _SMALL_SIZE_THRESHOLD:
        # Kernel dispatch + DMA round trip dwarfs ~1 KiB of compute.
        return _reference(output1, output2, target, margin)

    physical_vmem, cores = _tpu_hw()
    scoped_limit, input_budget = _vmem_budgets(physical_vmem)

    itemsize = jnp.dtype(output1.dtype).itemsize
    sub = _sublane_multiple(itemsize)

    # Inputs keep their native dtype (bf16 stays bf16 -> half the HBM traffic);
    # target is tiny, so casting/reshaping it in the wrapper is free.
    t = target.reshape(B, 1).astype(jnp.float32)
    margin_arr = jnp.asarray([margin], dtype=jnp.float32)

    if tile_rows is not None:
        tb = min(tile_rows, B)
        if tb != B:
            assert tb % sub == 0, (
                f"tile_rows override must be a multiple of {sub} for this dtype")
    else:
        tb = _pick_tile_rows(B, D, itemsize, input_budget, sub)
        # On 2-TC chips, split a single-tile batch in half so both cores
        # (and both DMA engines) are used.
        if cores >= 2 and tb >= B and B >= 2 * sub:
            half = _round_up((B + 1) // 2, sub)
            if half < B:
                tb = half

    nt = pl.cdiv(B, tb)          # total batch tiles
    nc = min(cores, nt)          # core partitions (1 on v5e/v6e, up to 2 on v7x)
    tpc = pl.cdiv(nt, nc)        # tiles per core partition

    # Padded VMEM actually used by the pipelined blocks (+ headroom); make sure
    # the scoped limit covers it (matters when tb was floored at one sublane).
    est_bytes = 2 * (2 * tb * D * itemsize) + 2 * (tb * 128 * 4) + (1 * _MIB)
    vmem_limit = max(scoped_limit, est_bytes)
    vmem_limit = min(vmem_limit, physical_vmem - 4 * _MIB)
    vmem_limit = max(vmem_limit, 4 * _MIB)

    def in_map(c, j, margin_sref):   # scalar-prefetch ref passed positionally (unused)
        del margin_sref
        return (jnp.minimum(c * tpc + j, nt - 1), 0)   # clamp ghost tiles; rows masked in-kernel

    kernel = functools.partial(
        _contrastive_loss_kernel, tb=tb, total_rows=B, tiles_per_core=tpc)

    partials = pl.pallas_call(
        kernel,
        out_shape=jax.ShapeDtypeStruct((nc, 1), jnp.float32),
        grid_spec=pltpu.PrefetchScalarGridSpec(
            num_scalar_prefetch=1,            # margin -> SMEM scalar
            grid=(nc, tpc),
            in_specs=[
                pl.BlockSpec((tb, D), in_map),
                pl.BlockSpec((tb, D), in_map),
                pl.BlockSpec((tb, 1), in_map),
            ],
            out_specs=pl.BlockSpec((1, 1), lambda c, j, m: (c, 0)),
            scratch_shapes=[pltpu.VMEM((1, 1), jnp.float32)],
        ),
        compiler_params=pltpu.CompilerParams(
            dimension_semantics=("parallel", "arbitrary"),
            vmem_limit_bytes=int(vmem_limit),
        ),
    )(margin_arr, output1, output2, t)

    # 0.5 factor folded out of the kernel; mean over the batch.
    return 0.5 * jnp.sum(partials) / B


def _reference(output1, output2, target, margin):
    # Pure-JAX reference matching the PyTorch forward.
    diff = output1.astype(jnp.float32) - output2.astype(jnp.float32) + _PAIRWISE_EPS
    d = jnp.sqrt(jnp.sum(diff * diff, axis=1))
    t = target.astype(jnp.float32)
    loss = 0.5 * (1.0 - t) * d * d + 0.5 * t * jnp.maximum(margin - d, 0.0) ** 2
    return jnp.mean(loss)


if __name__ == "__main__":
    key = jax.random.PRNGKey(0)
    k1, k2, k3 = jax.random.split(key, 3)

    # 1) Small shapes consistent with the module: batch=8, hidden=32.
    B, D = 8, 32
    margin = 1.0
    output1 = jax.random.normal(k1, (B, D), dtype=jnp.float32)
    output2 = jax.random.normal(k2, (B, D), dtype=jnp.float32)
    target = jax.random.bernoulli(k3, 0.5, (B,)).astype(jnp.int32)

    loss = contrastive_loss(output1, output2, target, margin, force_pallas=True)
    jax.block_until_ready(loss)
    ref = _reference(output1, output2, target, margin)
    assert jnp.allclose(loss, ref, atol=1e-5, rtol=1e-5), (loss, ref)

    # 2) Multi-tile grid, partial last tile (B % tile_rows != 0), and (on 2-TC
    #    chips) the core-partition / clamped ghost-tile path.
    B2, D2 = 72, 128
    o1b = jax.random.normal(k1, (B2, D2), dtype=jnp.float32)
    o2b = jax.random.normal(k2, (B2, D2), dtype=jnp.float32)
    tb_ = jax.random.bernoulli(k3, 0.5, (B2,)).astype(jnp.int32)
    loss2 = contrastive_loss(o1b, o2b, tb_, 1.5, force_pallas=True, tile_rows=32)
    jax.block_until_ready(loss2)
    ref2 = _reference(o1b, o2b, tb_, 1.5)
    assert jnp.allclose(loss2, ref2, atol=1e-5, rtol=1e-5), (loss2, ref2)

    # 3) bf16 inputs: exercises native-dtype loads, in-register upcast and the
    #    16-row sublane rounding / auto tile-size path.
    B3, D3 = 48, 64
    o1c = jax.random.normal(k1, (B3, D3), dtype=jnp.bfloat16)
    o2c = jax.random.normal(k2, (B3, D3), dtype=jnp.bfloat16)
    tc_ = jax.random.bernoulli(k3, 0.5, (B3,)).astype(jnp.int32)
    loss3 = contrastive_loss(o1c, o2c, tc_, 1.0, force_pallas=True)
    jax.block_until_ready(loss3)
    ref3 = _reference(o1c, o2c, tc_, 1.0)
    assert jnp.allclose(loss3, ref3, atol=1e-4, rtol=1e-4), (loss3, ref3)

    print("KERNEL_OK")
</pallas_src>

<mosaic_0001>
module attributes {stable_mosaic.version = 11 : i64} {
  func.func @_contrastive_loss_kernel(%arg0: i32, %arg1: i32, %arg2: memref<1xf32, #tpu.memory_space<smem>>, %arg3: memref<8x32xf32, #tpu.memory_space<vmem>>, %arg4: memref<8x32xf32, #tpu.memory_space<vmem>>, %arg5: memref<8x1xf32, #tpu.memory_space<vmem>>, %arg6: memref<1x1xf32, #tpu.memory_space<vmem>>, %arg7: memref<1x1xf32, #tpu.memory_space<vmem>>) attributes {dimension_semantics = [#tpu.dimension_semantics<parallel>, #tpu.dimension_semantics<arbitrary>], iteration_bounds = array<i64: 1, 1>, scalar_prefetch = 1 : i64, scratch_operands = 1 : i64, tpu.core_type = #tpu.core_type<tc>, window_params = [{transform_indices = @transform_0, window_bounds = array<i64: 8, 32>}, {transform_indices = @transform_1, window_bounds = array<i64: 8, 32>}, {transform_indices = @transform_2, window_bounds = array<i64: 8, 1>}, {transform_indices = @transform_3, window_bounds = array<i64: 1, 1>}]} {
    %c0_i32 = arith.constant 0 : i32
    %0 = arith.cmpi eq, %arg1, %c0_i32 : i32
    %1 = arith.extui %0 : i1 to i32
    %c0_i32_0 = arith.constant 0 : i32
    %2 = arith.cmpi ne, %1, %c0_i32_0 : i32
    scf.if %2 {
      %cst_16 = arith.constant 0.000000e+00 : f32
      %37 = vector.broadcast %cst_16 : f32 to vector<1x1xf32>
      %c0_17 = arith.constant 0 : index
      %c0_18 = arith.constant 0 : index
      %38 = vector.load %arg7[%c0_17, %c0_18] : memref<1x1xf32, #tpu.memory_space<vmem>>, vector<1x1xf32>
      tpu.vector_store %arg7[%c0_17, %c0_18], %37 {strides = array<i32>} : memref<1x1xf32, #tpu.memory_space<vmem>>, vector<1x1xf32>,
    } else {
    }
    %c1_i32 = arith.constant 1 : i32
    %3 = arith.muli %arg0, %c1_i32 : i32
    %4 = arith.addi %3, %arg1 : i32
    %c0 = arith.constant 0 : index
    %c0_1 = arith.constant 0 : index
    %5 = vector.load %arg3[%c0, %c0_1] : memref<8x32xf32, #tpu.memory_space<vmem>>, vector<8x32xf32>
    %c0_2 = arith.constant 0 : index
    %c0_3 = arith.constant 0 : index
    %6 = vector.load %arg4[%c0_2, %c0_3] : memref<8x32xf32, #tpu.memory_space<vmem>>, vector<8x32xf32>
    %7 = arith.subf %5, %6 : vector<8x32xf32>
    %cst = arith.constant 9.99999997E-7 : f32
    %8 = vector.broadcast %cst : f32 to vector<8x32xf32>
    %9 = arith.addf %7, %8 : vector<8x32xf32>
    %10 = arith.mulf %9, %9 : vector<8x32xf32>
    %cst_4 = arith.constant dense<0.000000e+00> : vector<8xf32>
    %11 = vector.multi_reduction <add>, %10, %cst_4 [1] : vector<8x32xf32> to vector<8xf32>
    %12 = vector.shape_cast %11 : vector<8xf32> to vector<8x1xf32>
    %13 = math.sqrt %12 : vector<8x1xf32>
    %c0_5 = arith.constant 0 : index
    %c0_6 = arith.constant 0 : index
    %14 = vector.load %arg5[%c0_5, %c0_6] : memref<8x1xf32, #tpu.memory_space<vmem>>, vector<8x1xf32>
    %c0_7 = arith.constant 0 : index
    %15 = memref.load %arg2[%c0_7] : memref<1xf32, #tpu.memory_space<smem>>
    %16 = vector.broadcast %15 : f32 to vector<8x1xf32>
    %17 = arith.subf %16, %13 : vector<8x1xf32>
    %cst_8 = arith.constant 0.000000e+00 : f32
    %18 = vector.broadcast %cst_8 : f32 to vector<8x1xf32>
    %19 = arith.maximumf %17, %18 : vector<8x1xf32>
    %cst_9 = arith.constant 1.000000e+00 : f32
    %20 = vector.broadcast %cst_9 : f32 to vector<8x1xf32>
    %21 = arith.subf %20, %14 : vector<8x1xf32>
    %22 = arith.mulf %21, %12 : vector<8x1xf32>
    %23 = arith.mulf %14, %19 : vector<8x1xf32>
    %24 = arith.mulf %23, %19 : vector<8x1xf32>
    %25 = arith.addf %22, %24 : vector<8x1xf32>
    %c1_i32_10 = arith.constant 1 : i32
    %26 = arith.addi %4, %c1_i32_10 : i32
    %c8_i32 = arith.constant 8 : i32
    %27 = arith.muli %26, %c8_i32 : i32
    %c8_i32_11 = arith.constant 8 : i32
    %28 = arith.cmpi sgt, %27, %c8_i32_11 : i32
    %true = arith.constant true
    %29 = arith.xori %28, %true : i1
    %30 = arith.extui %29 : i1 to i32
    %c0_i32_12 = arith.constant 0 : i32
    %31 = arith.cmpi ne, %30, %c0_i32_12 : i32
    scf.if %31 {
      %c0_16 = arith.constant 0 : index
      %c0_17 = arith.constant 0 : index
      %37 = vector.load %arg7[%c0_16, %c0_17] : memref<1x1xf32, #tpu.memory_space<vmem>>, vector<1x1xf32>
      %cst_18 = arith.constant dense<0.000000e+00> : vector<1xf32>
      %38 = vector.multi_reduction <add>, %25, %cst_18 [0] : vector<8x1xf32> to vector<1xf32>
      %39 = vector.shape_cast %38 : vector<1xf32> to vector<1x1xf32>
      %40 = arith.addf %37, %39 : vector<1x1xf32>
      %c0_19 = arith.constant 0 : index
      %c0_20 = arith.constant 0 : index
      %41 = vector.load %arg7[%c0_19, %c0_20] : memref<1x1xf32, #tpu.memory_space<vmem>>, vector<1x1xf32>
      tpu.vector_store %arg7[%c0_19, %c0_20], %40 {strides = array<i32>} : memref<1x1xf32, #tpu.memory_space<vmem>>, vector<1x1xf32>,
    } else {
    }
    %32 = arith.extui %28 : i1 to i32
    %c0_i32_13 = arith.constant 0 : i32
    %33 = arith.cmpi ne, %32, %c0_i32_13 : i32
    scf.if %33 {
      %c8_i32_16 = arith.constant 8 : i32
      %37 = arith.muli %4, %c8_i32_16 : i32
      %38 = tpu.iota {dimensions = array<i32: 0>} : vector<8x1xi32>
      %39 = vector.broadcast %37 : i32 to vector<8x1xi32>
      %40 = arith.addi %39, %38 : vector<8x1xi32>
      %c8_i32_17 = arith.constant 8 : i32
      %41 = vector.broadcast %c8_i32_17 : i32 to vector<8x1xi32>
      %42 = arith.cmpi slt, %40, %41 : vector<8x1xi32>
      %cst_18 = arith.constant 0.000000e+00 : f32
      %43 = vector.broadcast %cst_18 : f32 to vector<8x1xf32>
      %44 = arith.select %42, %25, %43 : vector<8x1xi1>, vector<8x1xf32>
      %c0_19 = arith.constant 0 : index
      %c0_20 = arith.constant 0 : index
      %45 = vector.load %arg7[%c0_19, %c0_20] : memref<1x1xf32, #tpu.memory_space<vmem>>, vector<1x1xf32>
      %cst_21 = arith.constant dense<0.000000e+00> : vector<1xf32>
      %46 = vector.multi_reduction <add>, %44, %cst_21 [0] : vector<8x1xf32> to vector<1xf32>
      %47 = vector.shape_cast %46 : vector<1xf32> to vector<1x1xf32>
      %48 = arith.addf %45, %47 : vector<1x1xf32>
      %c0_22 = arith.constant 0 : index
      %c0_23 = arith.constant 0 : index
      %49 = vector.load %arg7[%c0_22, %c0_23] : memref<1x1xf32, #tpu.memory_space<vmem>>, vector<1x1xf32>
      tpu.vector_store %arg7[%c0_22, %c0_23], %48 {strides = array<i32>} : memref<1x1xf32, #tpu.memory_space<vmem>>, vector<1x1xf32>,
    } else {
    }
    %c0_i32_14 = arith.constant 0 : i32
    %34 = arith.cmpi eq, %arg1, %c0_i32_14 : i32
    %35 = arith.extui %34 : i1 to i32
    %c0_i32_15 = arith.constant 0 : i32
    %36 = arith.cmpi ne, %35, %c0_i32_15 : i32
    scf.if %36 {
      %c0_16 = arith.constant 0 : index
      %c0_17 = arith.constant 0 : index
      %37 = vector.load %arg7[%c0_16, %c0_17] : memref<1x1xf32, #tpu.memory_space<vmem>>, vector<1x1xf32>
      %c0_18 = arith.constant 0 : index
      %c0_19 = arith.constant 0 : index
      %38 = vector.load %arg6[%c0_18, %c0_19] : memref<1x1xf32, #tpu.memory_space<vmem>>, vector<1x1xf32>
      tpu.vector_store %arg6[%c0_18, %c0_19], %37 {strides = array<i32>} : memref<1x1xf32, #tpu.memory_space<vmem>>, vector<1x1xf32>,
    } else {
    }
    return
  }
  func.func @transform_0(%arg0: i32, %arg1: i32, %arg2: memref<1xf32, #tpu.memory_space<smem>>) -> (i32, i32) {
    %c1_i32 = arith.constant 1 : i32
    %0 = arith.muli %arg0, %c1_i32 : i32
    %1 = arith.addi %0, %arg1 : i32
    %c0_i32 = arith.constant 0 : i32
    %2 = arith.minsi %1, %c0_i32 : i32
    %c0_i32_0 = arith.constant 0 : i32
    %c0_i32_1 = arith.constant 0 : i32
    return %2, %c0_i32_0 : i32, i32
  }
  func.func @transform_1(%arg0: i32, %arg1: i32, %arg2: memref<1xf32, #tpu.memory_space<smem>>) -> (i32, i32) {
    %c1_i32 = arith.constant 1 : i32
    %0 = arith.muli %arg0, %c1_i32 : i32
    %1 = arith.addi %0, %arg1 : i32
    %c0_i32 = arith.constant 0 : i32
    %2 = arith.minsi %1, %c0_i32 : i32
    %c0_i32_0 = arith.constant 0 : i32
    %c0_i32_1 = arith.constant 0 : i32
    return %2, %c0_i32_0 : i32, i32
  }
  func.func @transform_2(%arg0: i32, %arg1: i32, %arg2: memref<1xf32, #tpu.memory_space<smem>>) -> (i32, i32) {
    %c1_i32 = arith.constant 1 : i32
    %0 = arith.muli %arg0, %c1_i32 : i32
    %1 = arith.addi %0, %arg1 : i32
    %c0_i32 = arith.constant 0 : i32
    %2 = arith.minsi %1, %c0_i32 : i32
    %c0_i32_0 = arith.constant 0 : i32
    %c0_i32_1 = arith.constant 0 : i32
    return %2, %c0_i32_0 : i32, i32
  }
  func.func @transform_3(%arg0: i32, %arg1: i32, %arg2: memref<1xf32, #tpu.memory_space<smem>>) -> (i32, i32) {
    %c0_i32 = arith.constant 0 : i32
    %c0_i32_0 = arith.constant 0 : i32
    return %arg0, %c0_i32 : i32, i32
  }
}

</mosaic_0001>

<llo_original>
// kernel: tpu_custom_call.1
$region0: #{tpu_custom_call.1}
  #allocation0 [shape = 'u32[]', space=smem, size = 0x4, offset = 0x4, fixed_abs, tag = 'smem constant byte address 0x4 - core index']
  #allocation1 [shape = 'u32[144,128]{1,0:T(1,128)}', space=vmem, size = 0x12000, scoped, tag = 'internal scratch']
  #allocation2 [shape = 'f32[1,1]{1,0:T(1,128)}', space=vmem, size = 0x200, scoped, tag = 'scratch operand']
  #allocation3 [shape = 's32[1]{0}', space=sflag, size = 0x4, scoped, tag = 'scoped memory for tpu_custom_call.1']
  #allocation4 [shape = 'f32[1]{0:T(128)S(6)}', space=smem, size = 0x200, scoped, tag = 'prefetched SMEM operand 0']
  %s0 = inlined_call_operand.<no memory space> [shape: f32[1], index: 0, kind: input, shape index: {}]
  %s1 = inlined_call_operand.vmem [shape: f32[8,32], index: 1, kind: input, shape index: {}]
  %s2 = inlined_call_operand.vmem [shape: f32[8,32], index: 2, kind: input, shape index: {}]
  %s3 = inlined_call_operand.vmem [shape: f32[8,1], index: 3, kind: input, shape index: {}]
  %s4 = inlined_call_operand.hbm [shape: f32[1,1], index: 4, kind: output, shape index: {}]
  %s5 = sld [smem:[#allocation0]]
  $region38: #{tpu_custom_call.1} parent=0
    _
  %s7 = ssub.s32 1, %s5
  %s8 = scalar_select 0, %s7, %s5
  %9 = sst [smem:[#allocation4]] %s0
  $region1: #{tpu_custom_call.1} parent=0
    #allocation5 [shape = 'u8[512]{0}', space=vmem, size = 0x400, scoped, tag = 'output window, operand 0, single buffered']
    #allocation6 [shape = 's32[1]{0}', space=sflag, size = 0x4, scoped, tag = 'scoped memory for tpu_custom_call.1']
    %10 = vsyncpa [#allocation6], 0
    // Predicated region
    $region2: #{tpu_custom_call.1} parent=1 // pred_check
      _
    $region3: #{tpu_custom_call.1} parent=1 // pred_check_branch
      %12 = sbr.rel (0) target = $region5
    $region4: #{tpu_custom_call.1} parent=1 // pred_region
      %s13 = sadd.s32 0, 0
      %p14 = scmp.lt.s32.totalorder %s13, 0
      %s15 = scalar_select %p14, %s13, 0
      %p16 = scmp.lt.s32.totalorder %s15, 0
      %s17 = scalar_select %p16, %s15, 0
      %s18 = smul.addr %s17, 8
      %s19 = scalar_lea.vmem %s1, %s18
      %s20 = sadd.s32 0, 0
      %p21 = scmp.lt.s32.totalorder %s20, 0
      %s22 = scalar_select %p21, %s20, 0
    $region5: #{tpu_custom_call.1} parent=1 // pred_fallthru
      _
    // Predicated region
    $region6: #{tpu_custom_call.1} parent=1 // pred_check
      _
    $region7: #{tpu_custom_call.1} parent=1 // pred_check_branch
      %24 = sbr.rel (0) target = $region9
    $region8: #{tpu_custom_call.1} parent=1 // pred_region
      %s25 = sadd.s32 0, 0
      %p26 = scmp.lt.s32.totalorder %s25, 0
      %s27 = scalar_select %p26, %s25, 0
      %p28 = scmp.lt.s32.totalorder %s27, 0
      %s29 = scalar_select %p28, %s27, 0
      %s30 = smul.addr %s29, 8
      %s31 = scalar_lea.vmem %s2, %s30
      %s32 = sadd.s32 0, 0
      %p33 = scmp.lt.s32.totalorder %s32, 0
      %s34 = scalar_select %p33, %s32, 0
    $region9: #{tpu_custom_call.1} parent=1 // pred_fallthru
      _
    // Predicated region
    $region10: #{tpu_custom_call.1} parent=1 // pred_check
      _
    $region11: #{tpu_custom_call.1} parent=1 // pred_check_branch
      %36 = sbr.rel (0) target = $region13
    $region12: #{tpu_custom_call.1} parent=1 // pred_region
      %s37 = sadd.s32 0, 0
      %p38 = scmp.lt.s32.totalorder %s37, 0
      %s39 = scalar_select %p38, %s37, 0
      %p40 = scmp.lt.s32.totalorder %s39, 0
      %s41 = scalar_select %p40, %s39, 0
      %s42 = smul.addr %s41, 8
      %s43 = scalar_lea.vmem %s3, %s42
      %s44 = sadd.s32 0, 0
      %p45 = scmp.lt.s32.totalorder %s44, 0
      %s46 = scalar_select %p45, %s44, 0
    $region13: #{tpu_custom_call.1} parent=1 // pred_fallthru
      _
    %s47 = sadd.s32 0, 0
    %p48 = scmp.lt.s32.totalorder %s47, 0
    %s49 = scalar_select %p48, %s47, 0
    %p50 = scmp.lt.s32.totalorder %s49, 0
    %s51 = scalar_select %p50, %s49, 0
    %s52 = smul.addr %s51, 8
    %s53 = scalar_lea.vmem %s1, %s52
    %s54 = sadd.s32 0, 0
    %p55 = scmp.lt.s32.totalorder %s54, 0
    %s56 = scalar_select %p55, %s54, 0
    %p57 = scmp.lt.s32.totalorder %s56, 0
    %s58 = scalar_select %p57, %s56, 0
    %s59 = smul.addr %s58, 8
    %s60 = scalar_lea.vmem %s2, %s59
    %s61 = sadd.s32 0, 0
    %p62 = scmp.lt.s32.totalorder %s61, 0
    %s63 = scalar_select %p62, %s61, 0
    %p64 = scmp.lt.s32.totalorder %s63, 0
    %s65 = scalar_select %p64, %s63, 0
    %s66 = smul.addr %s65, 8
    %s67 = scalar_lea.vmem %s3, %s66
    %s68 = sadd.s32 0, 0
    %p69 = scmp.lt.s32.totalorder %s68, 0
    %s70 = scalar_select %p69, %s68, 0
    %p71 = scmp.lt.s32.totalorder %s70, 0
    %s72 = scalar_select %p71, %s70, 0
    %s73 = smul.addr %s72, 8
    %s74 = scalar_lea.vmem %s1, %s73
    %s75 = sadd.s32 0, 0
    %p76 = scmp.lt.s32.totalorder %s75, 0
    %s77 = scalar_select %p76, %s75, 0
    %s78 = sadd.s32 0, 0
    %p79 = scmp.lt.s32.totalorder %s78, 0
    %s80 = scalar_select %p79, %s78, 0
    %p81 = scmp.lt.s32.totalorder %s80, 0
    %s82 = scalar_select %p81, %s80, 0
    %s83 = smul.addr %s82, 8
    %s84 = scalar_lea.vmem %s2, %s83
    %s85 = sadd.s32 0, 0
    %p86 = scmp.lt.s32.totalorder %s85, 0
    %s87 = scalar_select %p86, %s85, 0
    %s88 = sadd.s32 0, 0
    %p89 = scmp.lt.s32.totalorder %s88, 0
    %s90 = scalar_select %p89, %s88, 0
    %p91 = scmp.lt.s32.totalorder %s90, 0
    %s92 = scalar_select %p91, %s90, 0
    %s93 = smul.addr %s92, 8
    %s94 = scalar_lea.vmem %s3, %s93
    %s95 = sadd.s32 0, 0
    %p96 = scmp.lt.s32.totalorder %s95, 0
    %s97 = scalar_select %p96, %s95, 0
    %p98 = scmp.eq.s32.totalorder 0, 0
    // Predicated region
    $region14: #{tpu_custom_call.1} parent=1 // pred_check
      %p99 = pneg %p98
    $region15: #{tpu_custom_call.1} parent=1 // pred_check_branch
      %101 = sbr.rel (%p99) target = $region17
    $region16: #{tpu_custom_call.1} parent=1 // pred_region
      %vm102 = vcmask 0
      %103 = vst.msk [vmem:[#allocation2] sm:$0x1] %vm102, 0.0
    $region17: #{tpu_custom_call.1} parent=1 // pred_fallthru
      _
    %s104 = sadd.s32 0, 0
    %v105 = vld [vmem:[%s74] sm:$0xff]
    %v106 = vld [vmem:[%s84] sm:$0xff]
    %v107 = vsub.f32 %v105, %v106
    %v108 = vadd.f32 %v107, 1e-06
    %v109 = vmul.f32 %v108, %v108
    %vm110 = vcmask 261120
    %v111 = vsel %vm110, %v109, 0.0
    %112 = vadd.xlane.f32.xlu0 %v111
    %v113 = vpop.xlane.xlu0 %112
    %v114 = vrsqrt.pop %v113
    %v115 = vmul.f32 %v113, %v114
    %vm116 = vcmp.eq.f32.partialorder %v113, inf
    %v117 = vsel %vm116, %v113, %v115
    %vm118 = vcmp.eq.f32.partialorder %v113, 0.0
    %v119 = vand.u32 %v113, 2147483648
    %v120 = vsel %vm118, %v119, %v117
    %v121 = vld [vmem:[%s94] sm:$0xff]
    %s122 = sld [smem:[#allocation4]]
    %v123 = vstv %s122
    %v124 = vsub.f32 %v123, %v120
    %v125 = vmax.f32 %v124, 0.0
    %v126 = vsub.f32 1.0, %v121
    %v127 = vmul.f32 %v126, %v113
    %v128 = vmul.f32 %v121, %v125
    %v129 = vmul.f32 %v128, %v125
    %v130 = vadd.f32 %v127, %v129
    %s131 = sadd.s32 %s104, 1
    %s132 = smul.u32 %s131, 8
    %p133 = scmp.gt.s32.totalorder %s132, 8
    %p134 = scmp.le.s32.totalorder %s132, 8
    // Predicated region
    $region18: #{tpu_custom_call.1} parent=1 // pred_check
      %p135 = pneg %p134
    $region19: #{tpu_custom_call.1} parent=1 // pred_check_branch
      %137 = sbr.rel (%p135) target = $region21
    $region20: #{tpu_custom_call.1} parent=1 // pred_region
      %v138 = vld [vmem:[#allocation2] sm:$0x1]
      %vm139 = vcmask 7168
      %v140 = vsel %vm139, %v130, 0.0
      %v141 = vrot.slane %v140, 4
      %v142 = vadd.f32 %v140, %v141
      %v143 = vrot.slane %v142, 2
      %v144 = vadd.f32 %v142, %v143
      %v145 = vrot.slane %v144, 1
      %v146 = vadd.f32 %v144, %v145
      %v147 = vadd.f32 %v138, %v146
      %vm148 = vcmask 0
      %149 = vst.msk [vmem:[#allocation2] sm:$0x1] %vm148, %v147
    $region21: #{tpu_custom_call.1} parent=1 // pred_fallthru
      _
    // Predicated region
    $region22: #{tpu_custom_call.1} parent=1 // pred_check
      %p150 = pneg %p133
    $region23: #{tpu_custom_call.1} parent=1 // pred_check_branch
      %152 = sbr.rel (%p150) target = $region25
    $region24: #{tpu_custom_call.1} parent=1 // pred_region
      %s153 = smul.u32 %s104, 8
      %v154 = vlaneseq
      %v155 = vshrl.u32 %v154, 7
      %v156 = vstv %s153
      %v157 = vadd.s32 %v156, %v155
      %vm158 = vcmp.lt.s32.totalorder %v157, 8
      %v159 = vsel %vm158, %v130, 0.0
      %v160 = vld [vmem:[#allocation2] sm:$0x1]
      %vm161 = vcmask 7168
      %v162 = vsel %vm161, %v159, 0.0
      %v163 = vrot.slane %v162, 4
      %v164 = vadd.f32 %v162, %v163
      %v165 = vrot.slane %v164, 2
      %v166 = vadd.f32 %v164, %v165
      %v167 = vrot.slane %v166, 1
      %v168 = vadd.f32 %v166, %v167
      %v169 = vadd.f32 %v160, %v168
      %vm170 = vcmask 0
      %171 = vst.msk [vmem:[#allocation2] sm:$0x1] %vm170, %v169
    $region25: #{tpu_custom_call.1} parent=1 // pred_fallthru
      _
    // Predicated region
    $region26: #{tpu_custom_call.1} parent=1 // pred_check
      %p172 = pneg %p98
    $region27: #{tpu_custom_call.1} parent=1 // pred_check_branch
      %174 = sbr.rel (%p172) target = $region29
    $region28: #{tpu_custom_call.1} parent=1 // pred_region
      %v175 = vld [vmem:[#allocation2] sm:$0x1]
      %vm176 = vcmask 0
      %177 = vst.msk [vmem:[#allocation5] sm:$0x1] %vm176, %v175
    $region29: #{tpu_custom_call.1} parent=1 // pred_fallthru
      _
    // Predicated region
    $region30: #{tpu_custom_call.1} parent=1 // pred_check
      _
    $region31: #{tpu_custom_call.1} parent=1 // pred_check_branch
      %179 = sbr.rel (0) target = $region33
    $region32: #{tpu_custom_call.1} parent=1 // pred_region
      %s181 = ssub.s32 16, 16
      %182 = vsyncadd [#allocation6], %s181
      %s184 = sshll.u32 [#allocation5], 4
      %s185 = int_to_ptr.vmem [resolvable:$true] %s184
      %187 = dma.vmem_to_hbm [thread:$0]  %s185, 16, %s4, [#allocation6]
    $region33: #{tpu_custom_call.1} parent=1 // pred_fallthru
      _
    // Predicated region
    $region34: #{tpu_custom_call.1} parent=1 // pred_check
      _
    $region35: #{tpu_custom_call.1} parent=1 // pred_check_branch
      %189 = sbr.rel (0) target = $region37
    $region36: #{tpu_custom_call.1} parent=1 // pred_region
      %190 = dma.done [#allocation6], 16
    $region37: #{tpu_custom_call.1} parent=1 // pred_fallthru
      _
    %191 = vsyncpa [#allocation6], 1

</llo_original>
